<compile_context>
chip_gen: v7x
topology: tpu7x:2x2x1
jax: 0.10.0
libtpu: 0.0.40
codegen_flags: <defaults>
</compile_context>

<pallas_src>
import functools

import jax
import jax.numpy as jnp
from jax import lax
from jax.experimental import pallas as pl
from jax.experimental.pallas import tpu as pltpu


def _round_up(x, m):
    return (x + m - 1) // m * m


def _vmem_capacity_bytes():
    try:
        return int(pltpu.get_tpu_info().vmem_capacity_bytes)
    except Exception:
        return 128 << 20   # v5e / v6e per-core VMEM


def _supcon_kernel(feat_row_ref, feat_t_ref, lbl_row_ref, lbl_col_ref, out_ref, *,
                   temperature, base_temperature, n_valid, tr):
    i = pl.program_id(0)

    fr = feat_row_ref[...]            # (TR, Dpad)   bf16 anchor rows
    ft = feat_t_ref[...]              # (Dpad, Npad) bf16 pre-transposed contrast matrix

    # anchor_dot_contrast / T : plain (M,K)x(K,N) contraction -> no XLU transpose,
    # f32 accumulation on the MXU.
    adc = lax.dot_general(
        fr, ft, dimension_numbers=(((1,), (0,)), ((), ())),
        preferred_element_type=jnp.float32) * jnp.float32(1.0 / temperature)

    npad = ft.shape[1]
    col = lax.broadcasted_iota(jnp.int32, (tr, npad), 1)
    row_g = lax.broadcasted_iota(jnp.int32, (tr, npad), 0) + i * tr
    valid_col = col < n_valid                 # real (non-padded) contrast columns
    mvalid = valid_col & (col != row_g)       # ... excluding the anchor itself
    neg_big = jnp.float32(-1e30)

    # numerical stability: per-row max over the real columns (diagonal included, as in ref)
    logits_max = jnp.max(jnp.where(valid_col, adc, neg_big), axis=1, keepdims=True)

    # softmax denominator over non-diagonal real columns
    # (reference adds 1e-20 per real column before the sum, then 1e-6 to the sum)
    exp_sum = jnp.sum(jnp.exp(jnp.where(mvalid, adc, neg_big) - logits_max),
                      axis=1, keepdims=True)
    exp_sum = exp_sum + jnp.float32(n_valid * 1e-20 + 1e-06)
    log_denom = logits_max + jnp.log(exp_sum)            # (TR, 1)

    # positive-pair mask built on the fly from labels (no N x N HBM operand).  log_prob is
    # folded algebraically, so only `adc` is touched by the positive-pair sums:
    #   sum(pos * log_prob) = sum(pos * adc) - mask_sum * (logits_max + log(exp_sum))
    pos_f = jnp.where((lbl_row_ref[...] == lbl_col_ref[...]) & mvalid,
                      jnp.float32(1.0), jnp.float32(0.0))
    mask_sum = jnp.sum(pos_f, axis=1, keepdims=True)
    pos_adc_sum = jnp.sum(pos_f * adc, axis=1, keepdims=True)

    mean_log_prob_pos = (pos_adc_sum - mask_sum * log_denom) / (mask_sum + jnp.float32(1e-06))
    loss_row = jnp.float32(-(temperature / base_temperature)) * mean_log_prob_pos

    # zero out padded anchor rows, reduce the block to a scalar partial sum
    row_idx = lax.broadcasted_iota(jnp.int32, (tr, 1), 0) + i * tr
    loss_row = jnp.where(row_idx < n_valid, loss_row, jnp.float32(0.0))
    partial = jnp.sum(loss_row)

    # lane/sublane-dense output tile; wrapper reads element [0, 0] of each block.
    # TODO(synk): a per-block SMEM scalar output would avoid this 4 KiB writeback (minor).
    out_ref[...] = jnp.full(out_ref.shape, partial, dtype=jnp.float32)


def supcon_loss(features, labels=None, mask=None, *, temperature=0.2,
                contrast_mode='all', base_temperature=1.0, row_block=None):
    """Pallas implementation of SupConLoss.forward (contrast_mode='all').

    features: [bsz, n_views, dim]
    labels:   [bsz] int (optional; None -> identity/eye mask)
    """
    if labels is not None and mask is not None:
        raise ValueError('Cannot define both `labels` and `mask`')

    bsz, n_views, dim = features.shape

    if contrast_mode == 'one':
        # TODO(synk): contrast_mode='one' (anchor = view 0 only) not wired into the kernel.
        raise NotImplementedError("contrast_mode='one' not implemented")
    if contrast_mode != 'all':
        raise ValueError('Unknown mode: {}'.format(contrast_mode))
    if mask is not None:
        # TODO(synk): arbitrary user-supplied [bsz, bsz] mask path not implemented; the
        # kernel builds the mask from labels to avoid shipping an O(N^2) operand.
        raise NotImplementedError('explicit `mask` not supported by the Pallas path')

    if labels is None:
        labels = jnp.arange(bsz, dtype=jnp.int32)   # eye(bsz) == equality mask of arange
    else:
        labels = jnp.asarray(labels).reshape(-1)
        if labels.shape[0] != bsz:
            raise ValueError('Num of labels does not match num of features')
        labels = labels.astype(jnp.int32)

    n = n_views * bsz
    # contrast_feature = torch.cat(torch.unbind(features, dim=1), dim=0)  (view-major rows)
    contrast_feature = jnp.transpose(features, (1, 0, 2)).reshape(n, dim)
    contrast_feature = contrast_feature.astype(jnp.bfloat16)   # bf16 into the MXU
    labels_n = jnp.tile(labels, n_views)                        # label of row k = labels[k % bsz]

    # ---- tiling (generation-aware) -------------------------------------------------
    vmem_cap = _vmem_capacity_bytes()
    if row_block is None:
        # TR=128 on 64 MiB/TC parts (v7x), TR=256 on 128 MiB parts (v5e/v6e)
        row_block = 128 if vmem_cap <= (80 << 20) else 256
    dpad = max(128, _round_up(dim, 128))
    n8 = _round_up(n, 8)
    if n8 >= 16:
        # always >= 2 row blocks so the "parallel" grid axis feeds both v7x TensorCores
        tr = min(int(row_block), _round_up((n8 + 1) // 2, 8))
    else:
        tr = n8
    npad = _round_up(n8, tr)
    nb = npad // tr

    feat = jnp.zeros((npad, dpad), jnp.bfloat16).at[:n, :dim].set(contrast_feature)
    # pre-transposed contrast matrix -> the kernel does a plain (M,K)x(K,N) MXU matmul
    feat_t = jnp.zeros((dpad, npad), jnp.bfloat16).at[:dim, :n].set(contrast_feature.T)
    lbl = jnp.full((npad,), -1, jnp.int32).at[:n].set(labels_n)
    lbl_row = lbl.reshape(npad, 1)
    lbl_col = lbl.reshape(1, npad)

    kernel = functools.partial(
        _supcon_kernel,
        temperature=float(temperature),
        base_temperature=float(base_temperature),
        n_valid=n, tr=tr)

    # VMEM budget: double-buffered anchor row block + (default double-buffered) resident
    # transposed contrast matrix + a handful of (TR, Npad) f32 temporaries; clamped to
    # 80% of the real per-core capacity (64 MiB on v7x, 128 MiB on v5e/v6e).
    vmem_est = 2 * tr * dpad * 2 + 2 * dpad * npad * 2 + 6 * tr * npad * 4 + (1 << 20)
    vmem_limit = int(min(max(vmem_est, 32 << 20), int(0.8 * vmem_cap)))
    # TODO(synk): single-buffer the constant (Dpad, Npad) operand (pipeline_mode=pl.Buffered(1))
    # and add column blocking (online softmax) once the working set approaches the VMEM cap;
    # not required at trainer batch sizes.

    out = pl.pallas_call(
        kernel,
        out_shape=jax.ShapeDtypeStruct((nb * 8, 128), jnp.float32),
        grid_spec=pltpu.PrefetchScalarGridSpec(
            num_scalar_prefetch=0,
            grid=(nb,),
            in_specs=[
                pl.BlockSpec((tr, dpad), lambda i: (i, 0)),     # anchor row block
                pl.BlockSpec((dpad, npad), lambda i: (0, 0)),   # transposed contrast matrix (fetched once)
                pl.BlockSpec((tr, 1), lambda i: (i, 0)),        # row labels
                pl.BlockSpec((1, npad), lambda i: (0, 0)),      # column labels
            ],
            out_specs=pl.BlockSpec((8, 128), lambda i: (i, 0)),
        ),
        compiler_params=pltpu.CompilerParams(
            dimension_semantics=("parallel",),
            vmem_limit_bytes=vmem_limit),
    )(feat, feat_t, lbl_row, lbl_col)

    partials = out.reshape(nb, 8, 128)[:, 0, 0]
    # loss.view(anchor_count, batch_size).mean() == sum over all N anchors / N
    # TODO(synk): forward pass only (no custom_vjp for the backward).
    return jnp.sum(partials) / jnp.float32(n)


def _reference_supcon(features, labels, temperature=0.2, base_temperature=1.0,
                      cast_bf16=False):
    """Pure-JAX reference mirroring the PyTorch forward."""
    bsz, n_views, dim = features.shape
    cf = jnp.transpose(features, (1, 0, 2)).reshape(n_views * bsz, dim)
    if cast_bf16:
        cf = cf.astype(jnp.bfloat16).astype(jnp.float32)
    n = n_views * bsz
    base_mask = (labels.reshape(-1, 1) == labels.reshape(1, -1)).astype(jnp.float32)
    adc = (cf @ cf.T) / temperature
    logits = adc - jnp.max(adc, axis=1, keepdims=True)
    mask = jnp.tile(base_mask, (n_views, n_views))
    logits_mask = 1.0 - jnp.eye(n, dtype=jnp.float32)
    mask = mask * logits_mask
    exp_logits = jnp.exp(logits) * logits_mask + 1e-20
    log_prob = logits - jnp.log(exp_logits.sum(1, keepdims=True) + 1e-06)
    mlpp = (mask * log_prob).sum(1) / (mask.sum(1) + 1e-06)
    loss = -(temperature / base_temperature) * mlpp
    return loss.reshape(n_views, bsz).mean()


def _check(features, labels, **kw):
    loss = jax.block_until_ready(supcon_loss(features, labels=labels, **kw))
    kw.pop('row_block', None)
    ref_b = _reference_supcon(features, labels, kw.get('temperature', 0.2),
                              kw.get('base_temperature', 1.0), cast_bf16=True)
    ref_f = _reference_supcon(features, labels, kw.get('temperature', 0.2),
                              kw.get('base_temperature', 1.0), cast_bf16=False)
    assert jnp.allclose(loss, ref_b, rtol=1e-2, atol=1e-2), (loss, ref_b)
    assert jnp.allclose(loss, ref_f, rtol=5e-2, atol=5e-2), (loss, ref_f)
    return loss


if __name__ == "__main__":
    key = jax.random.PRNGKey(0)
    kf, kl, kf2, kl2 = jax.random.split(key, 4)

    # primary case: bsz=8, 2 views, dim=32 (L2-normalized, typical SupCon usage)
    bsz, n_views, dim = 8, 2, 32
    features = jax.random.normal(kf, (bsz, n_views, dim), dtype=jnp.float32)
    features = features / jnp.linalg.norm(features, axis=-1, keepdims=True)
    labels = jax.random.randint(kl, (bsz,), 0, 4)

    _check(features, labels, temperature=0.2, contrast_mode='all', base_temperature=1.0)

    # explicit small row block (same 2-block grid path, exercises row_block override)
    _check(features, labels, temperature=0.2, contrast_mode='all',
           base_temperature=1.0, row_block=8)

    # padding path: N = 20 padded to 32 rows / columns
    bsz2 = 10
    features2 = jax.random.normal(kf2, (bsz2, n_views, dim), dtype=jnp.float32)
    features2 = features2 / jnp.linalg.norm(features2, axis=-1, keepdims=True)
    labels2 = jax.random.randint(kl2, (bsz2,), 0, 4)
    _check(features2, labels2, temperature=0.2, contrast_mode='all', base_temperature=1.0)

    print("KERNEL_OK")
</pallas_src>

<mosaic_0001>
module attributes {stable_mosaic.version = 11 : i64} {
  func.func @_supcon_kernel(%arg0: i32, %arg1: memref<8x128xbf16, #tpu.memory_space<vmem>>, %arg2: memref<128x16xbf16, #tpu.memory_space<vmem>>, %arg3: memref<8x1xi32, #tpu.memory_space<vmem>>, %arg4: memref<1x16xi32, #tpu.memory_space<vmem>>, %arg5: memref<8x128xf32, #tpu.memory_space<vmem>>) attributes {dimension_semantics = [#tpu.dimension_semantics<parallel>], iteration_bounds = array<i64: 2>, scalar_prefetch = 0 : i64, scratch_operands = 0 : i64, tpu.core_type = #tpu.core_type<tc>, window_params = [{transform_indices = @transform_0, window_bounds = array<i64: 8, 128>}, {pipeline_mode = #tpu.pipeline_mode<synchronous>, transform_indices = @transform_1, window_bounds = array<i64: 128, 16>}, {transform_indices = @transform_2, window_bounds = array<i64: 8, 1>}, {pipeline_mode = #tpu.pipeline_mode<synchronous>, transform_indices = @transform_3, window_bounds = array<i64: 1, 16>}, {transform_indices = @transform_4, window_bounds = array<i64: 8, 128>}]} {
    %c0 = arith.constant 0 : index
    %c0_0 = arith.constant 0 : index
    %0 = vector.load %arg1[%c0, %c0_0] : memref<8x128xbf16, #tpu.memory_space<vmem>>, vector<8x128xbf16>
    %c0_1 = arith.constant 0 : index
    %c0_2 = arith.constant 0 : index
    %1 = vector.load %arg2[%c0_1, %c0_2] : memref<128x16xbf16, #tpu.memory_space<vmem>>, vector<128x16xbf16>
    %cst = arith.constant dense<0.000000e+00> : vector<8x16xf32>
    %2 = tpu.matmul %0, %1, %cst {dimension_numbers = #tpu.dot_dimension_numbers<[1], [0], [0], [1], [0, 0, 1, 1], [], []>} : vector<8x128xbf16>, vector<128x16xbf16>, vector<8x16xf32> -> vector<8x16xf32>
    %cst_3 = arith.constant 5.000000e+00 : f32
    %3 = vector.broadcast %cst_3 : f32 to vector<8x16xf32>
    %4 = arith.mulf %2, %3 : vector<8x16xf32>
    %5 = tpu.iota {dimensions = array<i32: 1>} : vector<8x16xi32>
    %6 = tpu.iota {dimensions = array<i32: 0>} : vector<8x16xi32>
    %c8_i32 = arith.constant 8 : i32
    %7 = arith.muli %arg0, %c8_i32 : i32
    %8 = vector.broadcast %7 : i32 to vector<8x16xi32>
    %9 = arith.addi %6, %8 : vector<8x16xi32>
    %c16_i32 = arith.constant 16 : i32
    %10 = vector.broadcast %c16_i32 : i32 to vector<8x16xi32>
    %11 = arith.cmpi slt, %5, %10 : vector<8x16xi32>
    %12 = arith.cmpi ne, %5, %9 : vector<8x16xi32>
    %13 = arith.andi %11, %12 : vector<8x16xi1>
    %cst_4 = arith.constant -1.000000e+30 : f32
    %14 = vector.broadcast %cst_4 : f32 to vector<8x16xf32>
    %15 = arith.select %11, %4, %14 : vector<8x16xi1>, vector<8x16xf32>
    %cst_5 = arith.constant dense<0xFF800000> : vector<8xf32>
    %16 = vector.multi_reduction <maximumf>, %15, %cst_5 [1] : vector<8x16xf32> to vector<8xf32>
    %17 = vector.shape_cast %16 : vector<8xf32> to vector<8x1xf32>
    %cst_6 = arith.constant -1.000000e+30 : f32
    %18 = vector.broadcast %cst_6 : f32 to vector<8x16xf32>
    %19 = arith.select %13, %4, %18 : vector<8x16xi1>, vector<8x16xf32>
    %20 = vector.broadcast %17 : vector<8x1xf32> to vector<8x16xf32>
    %21 = arith.subf %19, %20 : vector<8x16xf32>
    %22 = math.exp %21 : vector<8x16xf32>
    %cst_7 = arith.constant dense<0.000000e+00> : vector<8xf32>
    %23 = vector.multi_reduction <add>, %22, %cst_7 [1] : vector<8x16xf32> to vector<8xf32>
    %24 = vector.shape_cast %23 : vector<8xf32> to vector<8x1xf32>
    %cst_8 = arith.constant 9.99999997E-7 : f32
    %25 = vector.broadcast %cst_8 : f32 to vector<8x1xf32>
    %26 = arith.addf %24, %25 : vector<8x1xf32>
    %27 = math.log %26 : vector<8x1xf32>
    %28 = arith.addf %17, %27 : vector<8x1xf32>
    %c0_9 = arith.constant 0 : index
    %c0_10 = arith.constant 0 : index
    %29 = vector.load %arg3[%c0_9, %c0_10] : memref<8x1xi32, #tpu.memory_space<vmem>>, vector<8x1xi32>
    %c0_11 = arith.constant 0 : index
    %c0_12 = arith.constant 0 : index
    %30 = vector.load %arg4[%c0_11, %c0_12] : memref<1x16xi32, #tpu.memory_space<vmem>>, vector<1x16xi32>
    %31 = vector.broadcast %29 : vector<8x1xi32> to vector<8x16xi32>
    %32 = vector.broadcast %30 : vector<1x16xi32> to vector<8x16xi32>
    %33 = arith.cmpi eq, %31, %32 : vector<8x16xi32>
    %34 = arith.andi %33, %13 : vector<8x16xi1>
    %cst_13 = arith.constant 1.000000e+00 : f32
    %cst_14 = arith.constant 0.000000e+00 : f32
    %35 = vector.broadcast %cst_13 : f32 to vector<8x16xf32>
    %36 = vector.broadcast %cst_14 : f32 to vector<8x16xf32>
    %37 = arith.select %34, %35, %36 : vector<8x16xi1>, vector<8x16xf32>
    %cst_15 = arith.constant dense<0.000000e+00> : vector<8xf32>
    %38 = vector.multi_reduction <add>, %37, %cst_15 [1] : vector<8x16xf32> to vector<8xf32>
    %39 = vector.shape_cast %38 : vector<8xf32> to vector<8x1xf32>
    %40 = arith.mulf %37, %4 : vector<8x16xf32>
    %cst_16 = arith.constant dense<0.000000e+00> : vector<8xf32>
    %41 = vector.multi_reduction <add>, %40, %cst_16 [1] : vector<8x16xf32> to vector<8xf32>
    %42 = vector.shape_cast %41 : vector<8xf32> to vector<8x1xf32>
    %43 = arith.mulf %39, %28 : vector<8x1xf32>
    %44 = arith.subf %42, %43 : vector<8x1xf32>
    %cst_17 = arith.constant 9.99999997E-7 : f32
    %45 = vector.broadcast %cst_17 : f32 to vector<8x1xf32>
    %46 = arith.addf %39, %45 : vector<8x1xf32>
    %47 = arith.divf %44, %46 : vector<8x1xf32>
    %cst_18 = arith.constant -2.000000e-01 : f32
    %48 = vector.broadcast %cst_18 : f32 to vector<8x1xf32>
    %49 = arith.mulf %48, %47 : vector<8x1xf32>
    %50 = tpu.iota {dimensions = array<i32: 0>} : vector<8x1xi32>
    %c8_i32_19 = arith.constant 8 : i32
    %51 = arith.muli %arg0, %c8_i32_19 : i32
    %52 = vector.broadcast %51 : i32 to vector<8x1xi32>
    %53 = arith.addi %50, %52 : vector<8x1xi32>
    %c16_i32_20 = arith.constant 16 : i32
    %54 = vector.broadcast %c16_i32_20 : i32 to vector<8x1xi32>
    %55 = arith.cmpi slt, %53, %54 : vector<8x1xi32>
    %cst_21 = arith.constant 0.000000e+00 : f32
    %56 = vector.broadcast %cst_21 : f32 to vector<8x1xf32>
    %57 = arith.select %55, %49, %56 : vector<8x1xi1>, vector<8x1xf32>
    %58 = vector.shape_cast %57 : vector<8x1xf32> to vector<1x8x1xf32>
    %cst_22 = arith.constant dense<0.000000e+00> : vector<1xf32>
    %59 = vector.multi_reduction <add>, %58, %cst_22 [1, 2] : vector<1x8x1xf32> to vector<1xf32>
    %60 = vector.shape_cast %59 : vector<1xf32> to vector<1x1x1xf32>
    %61 = vector.extract %60[0, 0, 0] : f32 from vector<1x1x1xf32>
    %62 = vector.broadcast %61 : f32 to vector<8x128xf32>
    %c0_23 = arith.constant 0 : index
    %c0_24 = arith.constant 0 : index
    %63 = vector.load %arg5[%c0_23, %c0_24] : memref<8x128xf32, #tpu.memory_space<vmem>>, vector<8x128xf32>
    tpu.vector_store %arg5[%c0_23, %c0_24], %62 {strides = array<i32>} : memref<8x128xf32, #tpu.memory_space<vmem>>, vector<8x128xf32>,
    return
  }
  func.func @transform_0(%arg0: i32) -> (i32, i32) {
    %c0_i32 = arith.constant 0 : i32
    %c0_i32_0 = arith.constant 0 : i32
    return %arg0, %c0_i32 : i32, i32
  }
  func.func @transform_1(%arg0: i32) -> (i32, i32) {
    %c0_i32 = arith.constant 0 : i32
    %c0_i32_0 = arith.constant 0 : i32
    %c0_i32_1 = arith.constant 0 : i32
    return %c0_i32, %c0_i32_0 : i32, i32
  }
  func.func @transform_2(%arg0: i32) -> (i32, i32) {
    %c0_i32 = arith.constant 0 : i32
    %c0_i32_0 = arith.constant 0 : i32
    return %arg0, %c0_i32 : i32, i32
  }
  func.func @transform_3(%arg0: i32) -> (i32, i32) {
    %c0_i32 = arith.constant 0 : i32
    %c0_i32_0 = arith.constant 0 : i32
    %c0_i32_1 = arith.constant 0 : i32
    return %c0_i32, %c0_i32_0 : i32, i32
  }
  func.func @transform_4(%arg0: i32) -> (i32, i32) {
    %c0_i32 = arith.constant 0 : i32
    %c0_i32_0 = arith.constant 0 : i32
    return %arg0, %c0_i32 : i32, i32
  }
}

</mosaic_0001>

<llo_original>
// kernel: tpu_custom_call.1
$region0: #{tpu_custom_call.1}
  #allocation0 [shape = 'u32[]', space=smem, size = 0x4, offset = 0x4, fixed_abs, tag = 'smem constant byte address 0x4 - core index']
  #allocation1 [shape = 'u32[144,128]{1,0:T(1,128)}', space=vmem, size = 0x12000, scoped, tag = 'internal scratch']
  %s0 = inlined_call_operand.vmem [shape: bf16[16,128], index: 0, kind: input, shape index: {}]
  %s1 = inlined_call_operand.vmem [shape: bf16[128,16], index: 1, kind: input, shape index: {}]
  %s2 = inlined_call_operand.vmem [shape: s32[16,1], index: 2, kind: input, shape index: {}]
  %s3 = inlined_call_operand.vmem [shape: s32[1,16], index: 3, kind: input, shape index: {}]
  %s4 = inlined_call_operand.hbm [shape: f32[16,128], index: 4, kind: output, shape index: {}]
  %s5 = sld [smem:[#allocation0]]
  $region49: #{tpu_custom_call.1} parent=0
    _
  %s7 = ssub.s32 1, %s5
  %s8 = scalar_select 0, %s7, %s5
  $region1: #{tpu_custom_call.1} parent=0
    #allocation2 [shape = 'u8[8192]{0}', space=vmem, size = 0x2000, scoped, tag = 'output window, operand 0']
    #allocation3 [shape = 's32[2]{0}', space=sflag, size = 0x8, scoped, tag = 'scoped memory for tpu_custom_call.1']
    %9 = vsyncpa [#allocation3], 0
    %s10 = scalar_lea.sflag [#allocation3], 1
    %11 = vsyncpa %s10, 0
    loop: start=0, step=1, limit=4
    $region2: #{tpu_custom_call.1} parent=1 // loop_pre_header
      _
    $region3: #{tpu_custom_call.1} parent=1 // loop_header
      %s13 = sphi 0, %s17
      %p14 = scmp.ge.s32.totalorder %s13, 4
      %s23 = sphi 0, %s25
      %s26 = sphi 0, %s23
      %s27 = sphi 0, %s26
      %s43 = sphi 0, %s27
      %s47 = sphi 0, %s47
      %s49 = sphi 0, %s47
      %s50 = sphi 0, %s49
      %s64 = sphi 0, %s50
      %s70 = sphi 0, %s72
      %s73 = sphi 0, %s70
      %s74 = sphi 0, %s73
      %s90 = sphi 0, %s74
      %s94 = sphi 0, %s94
      %s96 = sphi 0, %s94
      %s97 = sphi 0, %s96
      %s111 = sphi 0, %s97
      %s117 = sphi 0, %s119
      %s120 = sphi 0, %s117
      %s121 = sphi 0, %s120
      %s137 = sphi 0, %s121
    $region4: #{tpu_custom_call.1} parent=1 // loop_header_branch
      %16 = sbr.rel (%p14) target = $region8
    $region5: #{tpu_custom_call.1} parent=1 // loop_body
      %s18 = ssub.s32 %s13, 1
      %s19 = ssub.s32 %s13, 2
      %s20 = sadd.s32 %s13, 1
      %s21 = ssub.s32 %s13, %s20
      %p22 = scmp.eq.s32.totalorder %s21, 0
      %s24 = sadd.s32 %s23, 1
      %s25 = scalar_select %p22, %s23, %s24
      %p28 = pneg %p22
      %p29 = scmp.eq.s32.totalorder %s13, 1
      %p30 = por %p28, %p29
      %p31 = scmp.ne.s32.totalorder %s23, %s26
      %p32 = scmp.eq.s32.totalorder %s13, 0
      %p33 = por %p31, %p32
      %p34 = scmp.ne.s32.totalorder %s23, %s26
      %p35 = scmp.eq.s32.totalorder %s18, 1
      %p36 = por %p34, %p35
      %p37 = scmp.ne.s32.totalorder %s26, %s27
      %p38 = scmp.eq.s32.totalorder %s18, 0
      %p39 = por %p37, %p38
      %p40 = scmp.ne.s32.totalorder %s26, %s27
      %p41 = scmp.eq.s32.totalorder %s19, 1
      %p42 = por %p40, %p41
      %p44 = scmp.ne.s32.totalorder %s27, %s43
      %p45 = scmp.eq.s32.totalorder %s19, 0
      %p46 = por %p44, %p45
      %s48 = sadd.s32 %s47, 1
      %p51 = scmp.eq.s32.totalorder %s13, 1
      %p52 = scmp.ne.s32.totalorder %s47, %s49
      %p53 = scmp.eq.s32.totalorder %s13, 0
      %p54 = por %p52, %p53
      %p55 = scmp.ne.s32.totalorder %s47, %s49
      %p56 = scmp.eq.s32.totalorder %s18, 1
      %p57 = por %p55, %p56
      %p58 = scmp.ne.s32.totalorder %s49, %s50
      %p59 = scmp.eq.s32.totalorder %s18, 0
      %p60 = por %p58, %p59
      %p61 = scmp.ne.s32.totalorder %s49, %s50
      %p62 = scmp.eq.s32.totalorder %s19, 1
      %p63 = por %p61, %p62
      %p65 = scmp.ne.s32.totalorder %s50, %s64
      %p66 = scmp.eq.s32.totalorder %s19, 0
      %p67 = por %p65, %p66
      %s68 = ssub.s32 %s13, %s20
      %p69 = scmp.eq.s32.totalorder %s68, 0
      %s71 = sadd.s32 %s70, 1
      %s72 = scalar_select %p69, %s70, %s71
      %p75 = pneg %p69
      %p76 = scmp.eq.s32.totalorder %s13, 1
      %p77 = por %p75, %p76
      %p78 = scmp.ne.s32.totalorder %s70, %s73
      %p79 = scmp.eq.s32.totalorder %s13, 0
      %p80 = por %p78, %p79
      %p81 = scmp.ne.s32.totalorder %s70, %s73
      %p82 = scmp.eq.s32.totalorder %s18, 1
      %p83 = por %p81, %p82
      %p84 = scmp.ne.s32.totalorder %s73, %s74
      %p85 = scmp.eq.s32.totalorder %s18, 0
      %p86 = por %p84, %p85
      %p87 = scmp.ne.s32.totalorder %s73, %s74
      %p88 = scmp.eq.s32.totalorder %s19, 1
      %p89 = por %p87, %p88
      %p91 = scmp.ne.s32.totalorder %s74, %s90
      %p92 = scmp.eq.s32.totalorder %s19, 0
      %p93 = por %p91, %p92
      %s95 = sadd.s32 %s94, 1
      %p98 = scmp.eq.s32.totalorder %s13, 1
      %p99 = scmp.ne.s32.totalorder %s94, %s96
      %p100 = scmp.eq.s32.totalorder %s13, 0
      %p101 = por %p99, %p100
      %p102 = scmp.ne.s32.totalorder %s94, %s96
      %p103 = scmp.eq.s32.totalorder %s18, 1
      %p104 = por %p102, %p103
      %p105 = scmp.ne.s32.totalorder %s96, %s97
      %p106 = scmp.eq.s32.totalorder %s18, 0
      %p107 = por %p105, %p106
      %p108 = scmp.ne.s32.totalorder %s96, %s97
      %p109 = scmp.eq.s32.totalorder %s19, 1
      %p110 = por %p108, %p109
      %p112 = scmp.ne.s32.totalorder %s97, %s111
      %p113 = scmp.eq.s32.totalorder %s19, 0
      %p114 = por %p112, %p113
      %s115 = ssub.s32 %s13, %s20
      %p116 = scmp.eq.s32.totalorder %s115, 0
      %s118 = sadd.s32 %s117, 1
      %s119 = scalar_select %p116, %s117, %s118
      %p122 = pneg %p116
      %p123 = scmp.eq.s32.totalorder %s13, 1
      %p124 = por %p122, %p123
      %p125 = scmp.ne.s32.totalorder %s117, %s120
      %p126 = scmp.eq.s32.totalorder %s13, 0
      %p127 = por %p125, %p126
      %p128 = scmp.ne.s32.totalorder %s117, %s120
      %p129 = scmp.eq.s32.totalorder %s18, 1
      %p130 = por %p128, %p129
      %p131 = scmp.ne.s32.totalorder %s120, %s121
      %p132 = scmp.eq.s32.totalorder %s18, 0
      %p133 = por %p131, %p132
      %p134 = scmp.ne.s32.totalorder %s120, %s121
      %p135 = scmp.eq.s32.totalorder %s19, 1
      %p136 = por %p134, %p135
      %p138 = scmp.ne.s32.totalorder %s121, %s137
      %p139 = scmp.eq.s32.totalorder %s19, 0
      %p140 = por %p138, %p139
      %p141 = scmp.le.s32.totalorder 1, %s13
      %p142 = scmp.lt.s32.totalorder %s13, 3
      %p143 = pnand %p141, %p142
      %p144 = pneg %p143
      // Predicated region
      $region9: #{tpu_custom_call.1} parent=5 // pred_check
        _
      $region10: #{tpu_custom_call.1} parent=5 // pred_check_branch
        %146 = sbr.rel (%p143) target = $region12
      $region11: #{tpu_custom_call.1} parent=5 // pred_region
        %s147 = ssub.s32 %s13, 1
        // Predicated region
        $region13: #{tpu_custom_call.1} parent=11 // pred_check
          %p148 = pneg %p60
        $region14: #{tpu_custom_call.1} parent=11 // pred_check_branch
          %150 = sbr.rel (%p148) target = $region16
        $region15: #{tpu_custom_call.1} parent=11 // pred_region
          _
        $region16: #{tpu_custom_call.1} parent=11 // pred_fallthru
          _
        // Predicated region
        $region17: #{tpu_custom_call.1} parent=11 // pred_check
          %p151 = pneg %p107
        $region18: #{tpu_custom_call.1} parent=11 // pred_check_branch
          %153 = sbr.rel (%p151) target = $region20
        $region19: #{tpu_custom_call.1} parent=11 // pred_region
          _
        $region20: #{tpu_custom_call.1} parent=11 // pred_fallthru
          _
      $region12: #{tpu_custom_call.1} parent=5 // pred_fallthru
        _
      %p154 = scmp.lt.s32.totalorder %s13, 2
      // Predicated region
      $region21: #{tpu_custom_call.1} parent=5 // pred_check
        %p155 = pneg %p154
      $region22: #{tpu_custom_call.1} parent=5 // pred_check_branch
        %157 = sbr.rel (%p155) target = $region24
      $region23: #{tpu_custom_call.1} parent=5 // pred_region
        // Predicated region
        $region25: #{tpu_custom_call.1} parent=23 // pred_check
          %p158 = pneg %p33
        $region26: #{tpu_custom_call.1} parent=23 // pred_check_branch
          %160 = sbr.rel (%p158) target = $region28
        $region27: #{tpu_custom_call.1} parent=23 // pred_region
          %p161 = scmp.lt.s32.totalorder %s13, 1
          %s162 = scalar_select %p161, %s13, 1
          %s163 = smul.addr %s162, 4
          %s164 = scalar_lea.vmem %s0, %s163
        $region28: #{tpu_custom_call.1} parent=23 // pred_fallthru
          _
        // Predicated region
        $region29: #{tpu_custom_call.1} parent=23 // pred_check
          %p165 = pneg %p80
        $region30: #{tpu_custom_call.1} parent=23 // pred_check_branch
          %167 = sbr.rel (%p165) target = $region32
        $region31: #{tpu_custom_call.1} parent=23 // pred_region
          %p168 = scmp.lt.s32.totalorder %s13, 1
          %s169 = scalar_select %p168, %s13, 1
          %s170 = smul.addr %s169, 8
          %s171 = scalar_lea.vmem %s2, %s170
        $region32: #{tpu_custom_call.1} parent=23 // pred_fallthru
          _
      $region24: #{tpu_custom_call.1} parent=5 // pred_fallthru
        _
      %p172 = scmp.le.s32.totalorder 1, %s13
      %p173 = scmp.lt.s32.totalorder %s13, 3
      %p174 = pnand %p172, %p173
      %p175 = pneg %p174
      // Predicated region
      $region33: #{tpu_custom_call.1} parent=5 // pred_check
        _
      $region34: #{tpu_custom_call.1} parent=5 // pred_check_branch
        %177 = sbr.rel (%p174) target = $region36
      $region35: #{tpu_custom_call.1} parent=5 // pred_region
        %s178 = ssub.s32 %s13, 1
        %p179 = scmp.lt.s32.totalorder %s18, 1
        %s180 = scalar_select %p179, %s18, 1
        %s181 = smul.addr %s180, 4
        %s182 = scalar_lea.vmem %s0, %s181
        %p183 = pneg %p39
        %p184 = pneg %p36
        %p185 = pneg %p60
        %p186 = pneg %p57
        %p187 = scmp.lt.s32.totalorder %s18, 1
        %s188 = scalar_select %p187, %s18, 1
        %s189 = smul.addr %s188, 8
        %s190 = scalar_lea.vmem %s2, %s189
        %p191 = pneg %p86
        %p192 = pneg %p83
        %p193 = pneg %p107
        %p194 = pneg %p104
        %p195 = pneg %p133
        %p196 = pneg %p130
        %s197 = sand.u32 %s120, 1
        %s198 = scalar_lea.sflag [#allocation3], %s197
        %s199 = sand.u32 %s120, 1
        %s200 = smul.addr %s199, 8
        %s201 = scalar_lea.vmem [#allocation2], %s200
        %p202 = scmp.lt.s32.totalorder %s18, 1
        %s203 = scalar_select %p202, %s18, 1
        %s204 = smul.addr %s203, 4
        %s205 = scalar_lea.vmem %s0, %s204
        %p206 = scmp.lt.s32.totalorder %s18, 1
        %s207 = scalar_select %p206, %s18, 1
        %s208 = smul.addr %s207, 8
        %s209 = scalar_lea.vmem %s2, %s208
        %v211 = vld [vmem:[%s205] sm:$0xf]
        %v212 = vld [vmem:[%s1] sm:$0xf]
        %v213 = vld [vmem:[%s1 + $0x4] sm:$0xf]
        %v214 = vld [vmem:[%s1 + $0x8] sm:$0xf]
        %v215 = vld [vmem:[%s1 + $0xc] sm:$0xf]
        %v216 = vld [vmem:[%s1 + $0x10] sm:$0xf]
        %v217 = vld [vmem:[%s1 + $0x14] sm:$0xf]
        %v218 = vld [vmem:[%s1 + $0x18] sm:$0xf]
        %v219 = vld [vmem:[%s1 + $0x1c] sm:$0xf]
        %v220 = vld [vmem:[%s1 + $0x20] sm:$0xf]
        %v221 = vld [vmem:[%s1 + $0x24] sm:$0xf]
        %v222 = vld [vmem:[%s1 + $0x28] sm:$0xf]
        %v223 = vld [vmem:[%s1 + $0x2c] sm:$0xf]
        %v224 = vld [vmem:[%s1 + $0x30] sm:$0xf]
        %v225 = vld [vmem:[%s1 + $0x34] sm:$0xf]
        %v226 = vld [vmem:[%s1 + $0x38] sm:$0xf]
        %v227 = vld [vmem:[%s1 + $0x3c] sm:$0xf]
        %v244 = vunpack.c.l.b16 %v212
        %v245 = vunpack.c.l.b16 %v213
        %v246 = vunpack.c.l.b16 %v214
        %v247 = vunpack.c.l.b16 %v215
        %v248 = vunpack.c.l.b16 %v216
        %v249 = vunpack.c.l.b16 %v217
        %v250 = vunpack.c.l.b16 %v218
        %v251 = vunpack.c.l.b16 %v219
        %v252 = vunpack.c.l.b16 %v220
        %v253 = vunpack.c.l.b16 %v221
        %v254 = vunpack.c.l.b16 %v222
        %v255 = vunpack.c.l.b16 %v223
        %v256 = vunpack.c.l.b16 %v224
        %v257 = vunpack.c.l.b16 %v225
        %v258 = vunpack.c.l.b16 %v226
        %v259 = vunpack.c.l.b16 %v227
        %v260 = vpack.c.b16 %v245, %v244
        %v261 = vpack.c.b16 %v247, %v246
        %v262 = vpack.c.b16 %v249, %v248
        %v263 = vpack.c.b16 %v251, %v250
        %v264 = vpack.c.b16 %v253, %v252
        %v265 = vpack.c.b16 %v255, %v254
        %v266 = vpack.c.b16 %v257, %v256
        %v267 = vpack.c.b16 %v259, %v258
        %276 = vmatprep.subr.bf16.mxu0 0
        %277 = vmatpush1.bf16.msra.mxu0 %v260
        %278 = vmatprep.subr.bf16.mxu0 0
        %279 = vmatpush1.bf16.msra.mxu0 %v261
        %280 = vmatprep.subr.bf16.mxu0 0
        %281 = vmatpush1.bf16.msra.mxu0 %v262
        %282 = vmatprep.subr.bf16.mxu0 0
        %283 = vmatpush1.bf16.msra.mxu0 %v263
        %284 = vmatprep.subr.bf16.mxu0 0
        %285 = vmatpush1.bf16.msra.mxu0 %v264
        %286 = vmatprep.subr.bf16.mxu0 0
        %287 = vmatpush1.bf16.msra.mxu0 %v265
        %288 = vmatprep.subr.bf16.mxu0 0
        %289 = vmatpush1.bf16.msra.mxu0 %v266
        %290 = vmatprep.subr.bf16.mxu0 0
        %291 = vmatpush1.bf16.msra.mxu0 %v267
        %292 = vmatprep.subr.bf16.mxu0 0
        %293 = vmatpush1.bf16.msra.mxu0 0
        %294 = vmatprep.subr.bf16.mxu0 0
        %295 = vmatpush1.bf16.msra.mxu0 0
        %296 = vmatprep.subr.bf16.mxu0 0
        %297 = vmatpush1.bf16.msra.mxu0 0
        %298 = vmatprep.subr.bf16.mxu0 0
        %299 = vmatpush1.bf16.msra.mxu0 0
        %300 = vmatprep.subr.bf16.mxu0 0
        %301 = vmatpush1.bf16.msra.mxu0 0
        %302 = vmatprep.subr.bf16.mxu0 0
        %303 = vmatpush1.bf16.msra.mxu0 0
        %304 = vmatprep.subr.bf16.mxu0 0
        %305 = vmatpush1.bf16.msra.mxu0 0
        %306 = vmatprep.subr.bf16.mxu0 0
        %307 = vmatpush1.bf16.msra.mxu0 0
        %308 = vmatprep.mubr.bf16.mxu0 0
        %309 = vmatmul.mubr.bf16.gmra.mrb[0].mxu0 %v211
        %v310 = vpop.f32.mrb[0].mxu0
        %v311 = vadd.f32 0.0, %v310
        %v312 = vpop.f32.mrb[0].mxu0
        %v313 = vpop.f32.mrb[0].mxu0
        %v314 = vpop.f32.mrb[0].mxu0
        %315 = vdwg.mxu0
        %v316 = vmul.f32 %v311, 5.0
        %v317 = vlaneseq
        %v318 = vand.u32 %v317, 127
        %v319 = vlaneseq
        %v320 = vshrl.u32 %v319, 7
        %s321 = smul.u32 %s18, 8
        %v322 = vstv %s321
        %v323 = vadd.s32 %v320, %v322
        %vm324 = vcmp.lt.s32.totalorder %v318, 16
        %vm325 = vcmp.ne.s32.totalorder %v318, %v323
        %vm326 = vmand %vm324, %vm325
        %v327 = vsel %vm324, %v316, -1e+30
        %vm328 = vcmask 130048
        %v329 = vsel %vm328, %v327, -inf
        %330 = vmax.xlane.f32.xlu0 %v329
        %v331 = vpop.xlane.xlu0 %330
        %v332 = vsel %vm326, %v316, -1e+30
        %v333 = vsub.f32 %v332, %v331
        %v334 = vmul.f32 %v333, 1.442695
        %v335 = vpow.pop %v334
        %v336 = vsel %vm328, %v335, 0.0
        %337 = vadd.xlane.f32.xlu0 %v336
        %v338 = vpop.xlane.xlu0 %337
        %v339 = vadd.f32 %v338, 1e-06
        %v340 = vlog2.pop %v339
        %v341 = vmul.f32 %v340, 0.6931472
        %v342 = vadd.f32 %v331, %v341
        %v343 = vld [vmem:[%s209] sm:$0xff]
        %v344 = vld [vmem:[%s3] sm:$0x1]
        %345 = vset.pattern.permute.xlu0 0
        %346 = vperm.xlu0 %345, %v343
        %v347 = vpop.permute.xlu0 %346
        %v348 = vlaneseq
        %v349 = vshrl.u32 %v348, 7
        %v350 = vsub.s32 0, %v349
        %v351 = vrot.slane %v344, %v350
        %vm352 = vcmp.eq.s32.totalorder %v347, %v351
        %vm353 = vmand %vm352, %vm326
        %v354 = vsel %vm353, 1.0, 0.0
        %v355 = vsel %vm328, %v354, 0.0
        %356 = vadd.xlane.f32.xlu0 %v355
        %v357 = vpop.xlane.xlu0 %356
        %v358 = vmul.f32 %v354, %v316
        %v359 = vsel %vm328, %v358, 0.0
        %360 = vadd.xlane.f32.xlu0 %v359
        %v361 = vpop.xlane.xlu0 %360
        %v362 = vmul.f32 %v357, %v342
        %v363 = vsub.f32 %v361, %v362
        %v364 = vadd.f32 %v357, 1e-06
        %v365 = vrcp.pop %v364
        %v366 = vmul.f32 %v363, %v365
        %v367 = vmul.f32 %v366, -0.2
        %vm368 = vcmp.lt.s32.totalorder %v323, 16
        %v369 = vsel %vm368, %v367, 0.0
        %vm370 = vcmask 7168
        %v371 = vsel %vm370, %v369, 0.0
        %372 = vadd.xlane.f32.xlu0 %v371
        %v373 = vpop.xlane.xlu0 %372
        %v374 = vrot.slane %v373, 4
        %v375 = vadd.f32 %v373, %v374
        %v376 = vrot.slane %v375, 2
        %v377 = vadd.f32 %v375, %v376
        %v378 = vrot.slane %v377, 1
        %v379 = vadd.f32 %v377, %v378
        %s380 = vtos %v379
        %v381 = vstv %s380
        %382 = vst [vmem:[%s201] sm:$0xff] %v381
        %s383 = sand.u32 %s120, 1
        %s384 = scalar_lea.sflag [#allocation3], %s383
        %s385 = sand.u32 %s120, 1
        %s386 = smul.addr %s385, 8
        %s387 = scalar_lea.vmem [#allocation2], %s386
        // Predicated region
        $region37: #{tpu_custom_call.1} parent=35 // pred_check
          %p388 = pneg %p130
        $region38: #{tpu_custom_call.1} parent=35 // pred_check_branch
          %390 = sbr.rel (%p388) target = $region40
        $region39: #{tpu_custom_call.1} parent=35 // pred_region
          %s392 = ssub.s32 128, 128
          %393 = vsyncadd %s384, %s392
          %s394 = smul.addr %s18, 128
          %s395 = scalar_lea.hbm %s4, %s394
          %s397 = sshll.u32 %s387, 4
          %s398 = int_to_ptr.vmem [resolvable:$true] %s397
          %400 = dma.vmem_to_hbm [thread:$0]  %s398, 128, %s395, %s384
        $region40: #{tpu_custom_call.1} parent=35 // pred_fallthru
          _
      $region36: #{tpu_custom_call.1} parent=5 // pred_fallthru
        _
      %p401 = scmp.le.s32.totalorder 2, %s13
      // Predicated region
      $region41: #{tpu_custom_call.1} parent=5 // pred_check
        %p402 = pneg %p401
      $region42: #{tpu_custom_call.1} parent=5 // pred_check_branch
        %404 = sbr.rel (%p402) target = $region44
      $region43: #{tpu_custom_call.1} parent=5 // pred_region
        %s405 = ssub.s32 %s13, 2
        // Predicated region
        $region45: #{tpu_custom_call.1} parent=43 // pred_check
          %p406 = pneg %p136
        $region46: #{tpu_custom_call.1} parent=43 // pred_check_branch
          %408 = sbr.rel (%p406) target = $region48
        $region47: #{tpu_custom_call.1} parent=43 // pred_region
          %s409 = sand.u32 %s121, 1
          %s410 = scalar_lea.sflag [#allocation3], %s409
          %s411 = sand.u32 %s121, 1
          %s412 = smul.addr %s411, 8
          %s413 = scalar_lea.vmem [#allocation2], %s412
          %414 = dma.done %s410, 128
        $region48: #{tpu_custom_call.1} parent=43 // pred_fallthru
          _
      $region44: #{tpu_custom_call.1} parent=5 // pred_fallthru
        _
    $region6: #{tpu_custom_call.1} parent=1 // loop_footer
      %s17 = sadd.s32 1, %s13
    $region7: #{tpu_custom_call.1} parent=1 // loop_footer_branch
      %12 = sbr.rel target = $region3
    $region8: #{tpu_custom_call.1} parent=1 // loop_exit
      _
    %415 = vsyncpa [#allocation3], 1
    %s416 = scalar_lea.sflag [#allocation3], 1
    %417 = vsyncpa %s416, 1

</llo_original>
